<compile_context>
chip_gen: v6e
topology: v6e:2x2x1
jax: 0.10.0
libtpu: 0.0.40
codegen_flags: <defaults>
</compile_context>

<pallas_src>
import functools

import jax
import jax.numpy as jnp
from jax import lax
from jax.experimental import pallas as pl
from jax.experimental.pallas import tpu as pltpu

LANE = 128  # TPU lane width; conv2 output channels are padded to this


# ----------------------------------------------------------------------------
# In-kernel helpers
# ----------------------------------------------------------------------------
def _layer_normal_elu(h):
    """torch.std_mean (unbiased) layer-norm over last dim, then ELU(alpha=1)."""
    d = h.shape[-1]
    mean = jnp.mean(h, axis=-1, keepdims=True)
    centered = h - mean
    var_unbiased = jnp.sum(centered * centered, axis=-1, keepdims=True) / (d - 1)
    std = jnp.sqrt(var_unbiased)
    h = centered / (std + 1e-5)
    # ELU(alpha=1); min() keeps the unselected exp branch from overflowing
    return jnp.where(h > 0, h, jnp.exp(jnp.minimum(h, 0.0)) - 1.0)


def _gcn(a, x, w, b):
    """Dense GraphConv: A_hat @ (X @ W) + b, f32 accumulation on the MXU."""
    xw = jnp.dot(x, w, preferred_element_type=jnp.float32)
    return jnp.dot(a, xw, preferred_element_type=jnp.float32) + b


# ----------------------------------------------------------------------------
# Fused forward kernel: all GCN layers + layer_normal/ELU + max readout + softmax
# ----------------------------------------------------------------------------
def gnn_c_fused_kernel(a_ref, x_ref, w1_ref, b1_ref, wm_ref, bm_ref,
                       w2_ref, b2_ref, oh_ref, of_ref, *, n_mid, classes):
    a = a_ref[...]                                   # (N, N) resident for ALL layers

    # conv1 + layer_normal + ELU (dropout p=0 -> identity)
    h = _layer_normal_elu(_gcn(a, x_ref[...], w1_ref[...], b1_ref[...]))

    # conv1_0 .. conv1_{nlayer-3}: stacked weights, unrolled in-kernel loop
    def body(l, h_carry):
        return _layer_normal_elu(_gcn(a, h_carry, wm_ref[l], bm_ref[l]))

    h = lax.fori_loop(0, n_mid, body, h, unroll=True)

    feature = h                                      # (N, HIDDEN)

    # conv2 (output channels zero-padded to LANE -> lane-dense matmul & store)
    h2 = _gcn(a, feature, w2_ref[...], b2_ref[...])  # (N, LANE)

    # dgl.readout_nodes(op='max') over the single graph, then softmax on logits
    h_max = jnp.max(h2, axis=0, keepdims=True)       # (1, LANE)
    f_max = jnp.max(feature, axis=0, keepdims=True)  # (1, HIDDEN)

    col = lax.broadcasted_iota(jnp.int32, h_max.shape, 1)
    valid = col < classes
    hm = jnp.where(valid, h_max, -jnp.inf)
    z = hm - jnp.max(hm, axis=-1, keepdims=True)
    e = jnp.where(valid, jnp.exp(z), 0.0)
    inv = pl.reciprocal(jnp.sum(e, axis=-1, keepdims=True), approx=True)

    oh_ref[...] = e * inv                            # padded cols are exactly 0
    of_ref[...] = f_max


def gnn_c_forward(a_hat, ndata, kparams, classes):
    """Single fused pallas_call; returns (softmax logits (1,classes), feature (1,hidden))."""
    w1, b1, wm, bm, w2p, b2p = kparams
    hidden = w1.shape[1]
    n_mid = wm.shape[0]

    kernel = functools.partial(gnn_c_fused_kernel, n_mid=n_mid, classes=classes)
    vmem = lambda: pl.BlockSpec(memory_space=pltpu.MemorySpace.VMEM)

    oh_pad, f_out = pl.pallas_call(
        kernel,
        out_shape=(
            jax.ShapeDtypeStruct((1, LANE), jnp.float32),
            jax.ShapeDtypeStruct((1, hidden), jnp.float32),
        ),
        in_specs=[vmem() for _ in range(8)],
        out_specs=(vmem(), vmem()),
    )(a_hat, ndata, w1, b1, wm, bm, w2p, b2p)

    return oh_pad[:, :classes], f_out


# ----------------------------------------------------------------------------
# Helpers: graph construction + deterministic, kernel-ready params
# ----------------------------------------------------------------------------
def build_ring_adjacency(n):
    """Dense sym-normalized adjacency of a ring graph with self-loops."""
    a = jnp.zeros((n, n), dtype=jnp.float32)
    idx = jnp.arange(n)
    a = a.at[idx, (idx + 1) % n].set(1.0)
    a = a.at[(idx + 1) % n, idx].set(1.0)
    a = a + jnp.eye(n, dtype=jnp.float32)          # self-loops
    deg = jnp.sum(a, axis=1)
    d_inv_sqrt = 1.0 / jnp.sqrt(deg)
    return a * d_inv_sqrt[:, None] * d_inv_sqrt[None, :]


def init_params(key, inchannel, hidden, classes, nlayer):
    """Deterministic params, pre-packed for the fused kernel (done ONCE)."""
    assert nlayer >= 3, "fused kernel packing assumes at least one middle layer"
    dims = [inchannel] + [hidden] * (nlayer - 1) + [classes]
    ws, bs = [], []
    for i in range(nlayer):
        key, kw = jax.random.split(key)
        cin, cout = dims[i], dims[i + 1]
        scale = 1.0 / jnp.sqrt(jnp.float32(cin))
        ws.append(jax.random.uniform(kw, (cin, cout), jnp.float32, -scale, scale))
        bs.append(jnp.zeros((cout,), jnp.float32))

    # kernel-ready packing: 2-D biases, stacked middle weights, padded conv2
    w1 = ws[0]
    b1 = bs[0].reshape(1, hidden)
    wm = jnp.stack(ws[1:-1], axis=0)                                   # (nlayer-2, H, H)
    bm = jnp.stack([b.reshape(1, hidden) for b in bs[1:-1]], axis=0)   # (nlayer-2, 1, H)
    w2p = jnp.pad(ws[-1], ((0, 0), (0, LANE - classes)))               # (H, LANE)
    b2p = jnp.pad(bs[-1], (0, LANE - classes)).reshape(1, LANE)        # (1, LANE)
    return (w1, b1, wm, bm, w2p, b2p)


if __name__ == "__main__":
    # small shapes consistent with the module (hiddensize default = 128)
    N = 16            # nodes in the (single) graph
    INCH = 8          # inchannel
    HIDDEN = 128      # hiddensize (module default; lane-dense)
    CLASSES = 4
    NLAYER = 4        # conv1, conv1_0, conv1_1, conv2

    key = jax.random.PRNGKey(0)
    key, kx = jax.random.split(key)

    a_hat = build_ring_adjacency(N)                                   # (16, 16)
    ndata = jax.random.normal(kx, (N, INCH), dtype=jnp.float32)       # (16, 8)
    kparams = init_params(key, INCH, HIDDEN, CLASSES, NLAYER)

    fwd = jax.jit(gnn_c_forward, static_argnums=3)
    h_out, f_out = fwd(a_hat, ndata, kparams, CLASSES)
    jax.block_until_ready((h_out, f_out))

    assert h_out.shape == (1, CLASSES)
    assert f_out.shape == (1, HIDDEN)
    # softmax row sums to 1 (loose tol: approx EUP reciprocal in the kernel)
    assert jnp.allclose(jnp.sum(h_out, axis=-1), 1.0, atol=1e-2)
    assert bool(jnp.all(jnp.isfinite(h_out))) and bool(jnp.all(jnp.isfinite(f_out)))

    # TODO(synk): modenode=True branch (dgl.unbatch + per-graph last-node pick)
    # and dropout p>0 are not implemented; only the default modenode=False,
    # p=0.0 path is.

    print("KERNEL_OK")
</pallas_src>

<mosaic_0001>
module attributes {stable_mosaic.version = 11 : i64} {
  func.func @gnn_c_fused_kernel(%arg0: memref<16x16xf32, #tpu.memory_space<vmem>>, %arg1: memref<16x8xf32, #tpu.memory_space<vmem>>, %arg2: memref<8x128xf32, #tpu.memory_space<vmem>>, %arg3: memref<1x128xf32, #tpu.memory_space<vmem>>, %arg4: memref<2x128x128xf32, #tpu.memory_space<vmem>>, %arg5: memref<2x1x128xf32, #tpu.memory_space<vmem>>, %arg6: memref<128x128xf32, #tpu.memory_space<vmem>>, %arg7: memref<1x128xf32, #tpu.memory_space<vmem>>, %arg8: memref<1x128xf32, #tpu.memory_space<vmem>>, %arg9: memref<1x128xf32, #tpu.memory_space<vmem>>) attributes {dimension_semantics = [], scalar_prefetch = 0 : i64, scratch_operands = 0 : i64, tpu.core_type = #tpu.core_type<tc>} {
    %c0 = arith.constant 0 : index
    %c0_0 = arith.constant 0 : index
    %0 = vector.load %arg0[%c0, %c0_0] : memref<16x16xf32, #tpu.memory_space<vmem>>, vector<16x16xf32>
    %c0_1 = arith.constant 0 : index
    %c0_2 = arith.constant 0 : index
    %1 = vector.load %arg1[%c0_1, %c0_2] : memref<16x8xf32, #tpu.memory_space<vmem>>, vector<16x8xf32>
    %c0_3 = arith.constant 0 : index
    %c0_4 = arith.constant 0 : index
    %2 = vector.load %arg2[%c0_3, %c0_4] : memref<8x128xf32, #tpu.memory_space<vmem>>, vector<8x128xf32>
    %c0_5 = arith.constant 0 : index
    %c0_6 = arith.constant 0 : index
    %3 = vector.load %arg3[%c0_5, %c0_6] : memref<1x128xf32, #tpu.memory_space<vmem>>, vector<1x128xf32>
    %cst = arith.constant dense<0.000000e+00> : vector<16x128xf32>
    %4 = tpu.matmul %1, %2, %cst {dimension_numbers = #tpu.dot_dimension_numbers<[1], [0], [0], [1], [0, 0, 1, 1], [], []>} : vector<16x8xf32>, vector<8x128xf32>, vector<16x128xf32> -> vector<16x128xf32>
    %cst_7 = arith.constant dense<0.000000e+00> : vector<16x128xf32>
    %5 = tpu.matmul %0, %4, %cst_7 {dimension_numbers = #tpu.dot_dimension_numbers<[1], [0], [0], [1], [0, 0, 1, 1], [], []>} : vector<16x16xf32>, vector<16x128xf32>, vector<16x128xf32> -> vector<16x128xf32>
    %6 = vector.broadcast %3 : vector<1x128xf32> to vector<16x128xf32>
    %7 = arith.addf %5, %6 : vector<16x128xf32>
    %cst_8 = arith.constant dense<0.000000e+00> : vector<16xf32>
    %8 = vector.multi_reduction <add>, %7, %cst_8 [1] : vector<16x128xf32> to vector<16xf32>
    %9 = vector.shape_cast %8 : vector<16xf32> to vector<16x1xf32>
    %cst_9 = arith.constant 1.280000e+02 : f32
    %10 = vector.broadcast %cst_9 : f32 to vector<16x1xf32>
    %11 = arith.divf %9, %10 : vector<16x1xf32>
    %12 = vector.broadcast %11 : vector<16x1xf32> to vector<16x128xf32>
    %13 = arith.subf %7, %12 : vector<16x128xf32>
    %14 = arith.mulf %13, %13 : vector<16x128xf32>
    %cst_10 = arith.constant dense<0.000000e+00> : vector<16xf32>
    %15 = vector.multi_reduction <add>, %14, %cst_10 [1] : vector<16x128xf32> to vector<16xf32>
    %16 = vector.shape_cast %15 : vector<16xf32> to vector<16x1xf32>
    %cst_11 = arith.constant 1.270000e+02 : f32
    %17 = vector.broadcast %cst_11 : f32 to vector<16x1xf32>
    %18 = arith.divf %16, %17 : vector<16x1xf32>
    %19 = math.sqrt %18 : vector<16x1xf32>
    %cst_12 = arith.constant 9.99999974E-6 : f32
    %20 = vector.broadcast %cst_12 : f32 to vector<16x1xf32>
    %21 = arith.addf %19, %20 : vector<16x1xf32>
    %22 = vector.broadcast %21 : vector<16x1xf32> to vector<16x128xf32>
    %23 = arith.divf %13, %22 : vector<16x128xf32>
    %cst_13 = arith.constant 0.000000e+00 : f32
    %24 = vector.broadcast %cst_13 : f32 to vector<16x128xf32>
    %25 = arith.cmpf ogt, %23, %24 : vector<16x128xf32>
    %cst_14 = arith.constant 0.000000e+00 : f32
    %26 = vector.broadcast %cst_14 : f32 to vector<16x128xf32>
    %27 = arith.minimumf %23, %26 : vector<16x128xf32>
    %28 = math.exp %27 : vector<16x128xf32>
    %cst_15 = arith.constant 1.000000e+00 : f32
    %29 = vector.broadcast %cst_15 : f32 to vector<16x128xf32>
    %30 = arith.subf %28, %29 : vector<16x128xf32>
    %31 = arith.select %25, %23, %30 : vector<16x128xi1>, vector<16x128xf32>
    %c0_i32 = arith.constant 0 : i32
    %32 = arith.index_cast %c0_i32 : i32 to index
    %c0_16 = arith.constant 0 : index
    %c0_17 = arith.constant 0 : index
    %33 = vector.load %arg4[%32, %c0_16, %c0_17] : memref<2x128x128xf32, #tpu.memory_space<vmem>>, vector<1x128x128xf32>
    %34 = vector.shape_cast %33 : vector<1x128x128xf32> to vector<128x128xf32>
    %35 = arith.index_cast %c0_i32 : i32 to index
    %c0_18 = arith.constant 0 : index
    %c0_19 = arith.constant 0 : index
    %36 = vector.load %arg5[%35, %c0_18, %c0_19] : memref<2x1x128xf32, #tpu.memory_space<vmem>>, vector<1x1x128xf32>
    %37 = vector.shape_cast %36 : vector<1x1x128xf32> to vector<1x128xf32>
    %cst_20 = arith.constant dense<0.000000e+00> : vector<16x128xf32>
    %38 = tpu.matmul %31, %34, %cst_20 {dimension_numbers = #tpu.dot_dimension_numbers<[1], [0], [0], [1], [0, 0, 1, 1], [], []>} : vector<16x128xf32>, vector<128x128xf32>, vector<16x128xf32> -> vector<16x128xf32>
    %cst_21 = arith.constant dense<0.000000e+00> : vector<16x128xf32>
    %39 = tpu.matmul %0, %38, %cst_21 {dimension_numbers = #tpu.dot_dimension_numbers<[1], [0], [0], [1], [0, 0, 1, 1], [], []>} : vector<16x16xf32>, vector<16x128xf32>, vector<16x128xf32> -> vector<16x128xf32>
    %40 = vector.broadcast %37 : vector<1x128xf32> to vector<16x128xf32>
    %41 = arith.addf %39, %40 : vector<16x128xf32>
    %cst_22 = arith.constant dense<0.000000e+00> : vector<16xf32>
    %42 = vector.multi_reduction <add>, %41, %cst_22 [1] : vector<16x128xf32> to vector<16xf32>
    %43 = vector.shape_cast %42 : vector<16xf32> to vector<16x1xf32>
    %cst_23 = arith.constant 1.280000e+02 : f32
    %44 = vector.broadcast %cst_23 : f32 to vector<16x1xf32>
    %45 = arith.divf %43, %44 : vector<16x1xf32>
    %46 = vector.broadcast %45 : vector<16x1xf32> to vector<16x128xf32>
    %47 = arith.subf %41, %46 : vector<16x128xf32>
    %48 = arith.mulf %47, %47 : vector<16x128xf32>
    %cst_24 = arith.constant dense<0.000000e+00> : vector<16xf32>
    %49 = vector.multi_reduction <add>, %48, %cst_24 [1] : vector<16x128xf32> to vector<16xf32>
    %50 = vector.shape_cast %49 : vector<16xf32> to vector<16x1xf32>
    %cst_25 = arith.constant 1.270000e+02 : f32
    %51 = vector.broadcast %cst_25 : f32 to vector<16x1xf32>
    %52 = arith.divf %50, %51 : vector<16x1xf32>
    %53 = math.sqrt %52 : vector<16x1xf32>
    %cst_26 = arith.constant 9.99999974E-6 : f32
    %54 = vector.broadcast %cst_26 : f32 to vector<16x1xf32>
    %55 = arith.addf %53, %54 : vector<16x1xf32>
    %56 = vector.broadcast %55 : vector<16x1xf32> to vector<16x128xf32>
    %57 = arith.divf %47, %56 : vector<16x128xf32>
    %cst_27 = arith.constant 0.000000e+00 : f32
    %58 = vector.broadcast %cst_27 : f32 to vector<16x128xf32>
    %59 = arith.cmpf ogt, %57, %58 : vector<16x128xf32>
    %cst_28 = arith.constant 0.000000e+00 : f32
    %60 = vector.broadcast %cst_28 : f32 to vector<16x128xf32>
    %61 = arith.minimumf %57, %60 : vector<16x128xf32>
    %62 = math.exp %61 : vector<16x128xf32>
    %cst_29 = arith.constant 1.000000e+00 : f32
    %63 = vector.broadcast %cst_29 : f32 to vector<16x128xf32>
    %64 = arith.subf %62, %63 : vector<16x128xf32>
    %65 = arith.select %59, %57, %64 : vector<16x128xi1>, vector<16x128xf32>
    %c1_i32 = arith.constant 1 : i32
    %66 = arith.index_cast %c1_i32 : i32 to index
    %c0_30 = arith.constant 0 : index
    %c0_31 = arith.constant 0 : index
    %67 = vector.load %arg4[%66, %c0_30, %c0_31] : memref<2x128x128xf32, #tpu.memory_space<vmem>>, vector<1x128x128xf32>
    %68 = vector.shape_cast %67 : vector<1x128x128xf32> to vector<128x128xf32>
    %69 = arith.index_cast %c1_i32 : i32 to index
    %c0_32 = arith.constant 0 : index
    %c0_33 = arith.constant 0 : index
    %70 = vector.load %arg5[%69, %c0_32, %c0_33] : memref<2x1x128xf32, #tpu.memory_space<vmem>>, vector<1x1x128xf32>
    %71 = vector.shape_cast %70 : vector<1x1x128xf32> to vector<1x128xf32>
    %cst_34 = arith.constant dense<0.000000e+00> : vector<16x128xf32>
    %72 = tpu.matmul %65, %68, %cst_34 {dimension_numbers = #tpu.dot_dimension_numbers<[1], [0], [0], [1], [0, 0, 1, 1], [], []>} : vector<16x128xf32>, vector<128x128xf32>, vector<16x128xf32> -> vector<16x128xf32>
    %cst_35 = arith.constant dense<0.000000e+00> : vector<16x128xf32>
    %73 = tpu.matmul %0, %72, %cst_35 {dimension_numbers = #tpu.dot_dimension_numbers<[1], [0], [0], [1], [0, 0, 1, 1], [], []>} : vector<16x16xf32>, vector<16x128xf32>, vector<16x128xf32> -> vector<16x128xf32>
    %74 = vector.broadcast %71 : vector<1x128xf32> to vector<16x128xf32>
    %75 = arith.addf %73, %74 : vector<16x128xf32>
    %cst_36 = arith.constant dense<0.000000e+00> : vector<16xf32>
    %76 = vector.multi_reduction <add>, %75, %cst_36 [1] : vector<16x128xf32> to vector<16xf32>
    %77 = vector.shape_cast %76 : vector<16xf32> to vector<16x1xf32>
    %cst_37 = arith.constant 1.280000e+02 : f32
    %78 = vector.broadcast %cst_37 : f32 to vector<16x1xf32>
    %79 = arith.divf %77, %78 : vector<16x1xf32>
    %80 = vector.broadcast %79 : vector<16x1xf32> to vector<16x128xf32>
    %81 = arith.subf %75, %80 : vector<16x128xf32>
    %82 = arith.mulf %81, %81 : vector<16x128xf32>
    %cst_38 = arith.constant dense<0.000000e+00> : vector<16xf32>
    %83 = vector.multi_reduction <add>, %82, %cst_38 [1] : vector<16x128xf32> to vector<16xf32>
    %84 = vector.shape_cast %83 : vector<16xf32> to vector<16x1xf32>
    %cst_39 = arith.constant 1.270000e+02 : f32
    %85 = vector.broadcast %cst_39 : f32 to vector<16x1xf32>
    %86 = arith.divf %84, %85 : vector<16x1xf32>
    %87 = math.sqrt %86 : vector<16x1xf32>
    %cst_40 = arith.constant 9.99999974E-6 : f32
    %88 = vector.broadcast %cst_40 : f32 to vector<16x1xf32>
    %89 = arith.addf %87, %88 : vector<16x1xf32>
    %90 = vector.broadcast %89 : vector<16x1xf32> to vector<16x128xf32>
    %91 = arith.divf %81, %90 : vector<16x128xf32>
    %cst_41 = arith.constant 0.000000e+00 : f32
    %92 = vector.broadcast %cst_41 : f32 to vector<16x128xf32>
    %93 = arith.cmpf ogt, %91, %92 : vector<16x128xf32>
    %cst_42 = arith.constant 0.000000e+00 : f32
    %94 = vector.broadcast %cst_42 : f32 to vector<16x128xf32>
    %95 = arith.minimumf %91, %94 : vector<16x128xf32>
    %96 = math.exp %95 : vector<16x128xf32>
    %cst_43 = arith.constant 1.000000e+00 : f32
    %97 = vector.broadcast %cst_43 : f32 to vector<16x128xf32>
    %98 = arith.subf %96, %97 : vector<16x128xf32>
    %99 = arith.select %93, %91, %98 : vector<16x128xi1>, vector<16x128xf32>
    %c2_i32 = arith.constant 2 : i32
    %c0_44 = arith.constant 0 : index
    %c0_45 = arith.constant 0 : index
    %100 = vector.load %arg6[%c0_44, %c0_45] : memref<128x128xf32, #tpu.memory_space<vmem>>, vector<128x128xf32>
    %c0_46 = arith.constant 0 : index
    %c0_47 = arith.constant 0 : index
    %101 = vector.load %arg7[%c0_46, %c0_47] : memref<1x128xf32, #tpu.memory_space<vmem>>, vector<1x128xf32>
    %cst_48 = arith.constant dense<0.000000e+00> : vector<16x128xf32>
    %102 = tpu.matmul %99, %100, %cst_48 {dimension_numbers = #tpu.dot_dimension_numbers<[1], [0], [0], [1], [0, 0, 1, 1], [], []>} : vector<16x128xf32>, vector<128x128xf32>, vector<16x128xf32> -> vector<16x128xf32>
    %cst_49 = arith.constant dense<0.000000e+00> : vector<16x128xf32>
    %103 = tpu.matmul %0, %102, %cst_49 {dimension_numbers = #tpu.dot_dimension_numbers<[1], [0], [0], [1], [0, 0, 1, 1], [], []>} : vector<16x16xf32>, vector<16x128xf32>, vector<16x128xf32> -> vector<16x128xf32>
    %104 = vector.broadcast %101 : vector<1x128xf32> to vector<16x128xf32>
    %105 = arith.addf %103, %104 : vector<16x128xf32>
    %cst_50 = arith.constant dense<0xFF800000> : vector<128xf32>
    %106 = vector.multi_reduction <maximumf>, %105, %cst_50 [0] : vector<16x128xf32> to vector<128xf32>
    %107 = vector.shape_cast %106 : vector<128xf32> to vector<1x128xf32>
    %cst_51 = arith.constant dense<0xFF800000> : vector<128xf32>
    %108 = vector.multi_reduction <maximumf>, %99, %cst_51 [0] : vector<16x128xf32> to vector<128xf32>
    %109 = vector.shape_cast %108 : vector<128xf32> to vector<1x128xf32>
    %110 = tpu.iota {dimensions = array<i32: 1>} : vector<1x128xi32>
    %c4_i32 = arith.constant 4 : i32
    %111 = vector.broadcast %c4_i32 : i32 to vector<1x128xi32>
    %112 = arith.cmpi slt, %110, %111 : vector<1x128xi32>
    %cst_52 = arith.constant 0xFF800000 : f32
    %113 = vector.broadcast %cst_52 : f32 to vector<1x128xf32>
    %114 = arith.select %112, %107, %113 : vector<1x128xi1>, vector<1x128xf32>
    %cst_53 = arith.constant dense<0xFF800000> : vector<1xf32>
    %115 = vector.multi_reduction <maximumf>, %114, %cst_53 [1] : vector<1x128xf32> to vector<1xf32>
    %116 = vector.shape_cast %115 : vector<1xf32> to vector<1x1xf32>
    %117 = vector.broadcast %116 : vector<1x1xf32> to vector<1x128xf32>
    %118 = arith.subf %114, %117 : vector<1x128xf32>
    %119 = math.exp %118 : vector<1x128xf32>
    %cst_54 = arith.constant 0.000000e+00 : f32
    %120 = vector.broadcast %cst_54 : f32 to vector<1x128xf32>
    %121 = arith.select %112, %119, %120 : vector<1x128xi1>, vector<1x128xf32>
    %cst_55 = arith.constant dense<0.000000e+00> : vector<1xf32>
    %122 = vector.multi_reduction <add>, %121, %cst_55 [1] : vector<1x128xf32> to vector<1xf32>
    %123 = vector.shape_cast %122 : vector<1xf32> to vector<1x1xf32>
    %124 = tpu.reciprocal %123 {approx = true} : vector<1x1xf32> -> vector<1x1xf32>
    %125 = vector.broadcast %124 : vector<1x1xf32> to vector<1x128xf32>
    %126 = arith.mulf %121, %125 : vector<1x128xf32>
    %c0_56 = arith.constant 0 : index
    %c0_57 = arith.constant 0 : index
    %127 = vector.load %arg8[%c0_56, %c0_57] : memref<1x128xf32, #tpu.memory_space<vmem>>, vector<1x128xf32>
    tpu.vector_store %arg8[%c0_56, %c0_57], %126 {strides = array<i32>} : memref<1x128xf32, #tpu.memory_space<vmem>>, vector<1x128xf32>,
    %c0_58 = arith.constant 0 : index
    %c0_59 = arith.constant 0 : index
    %128 = vector.load %arg9[%c0_58, %c0_59] : memref<1x128xf32, #tpu.memory_space<vmem>>, vector<1x128xf32>
    tpu.vector_store %arg9[%c0_58, %c0_59], %109 {strides = array<i32>} : memref<1x128xf32, #tpu.memory_space<vmem>>, vector<1x128xf32>,
    return
  }
}

</mosaic_0001>

<llo_original>
// kernel: gnn_c_forward.1
$region0: #{gnn_c_forward.1}
  #allocation0 [shape = 'u32[]', space=smem, size = 0x4, offset = 0x4, fixed_abs, tag = 'smem constant byte address 0x4 - core index']
  #allocation1 [shape = 'u32[144,128]{1,0:T(1,128)}', space=vmem, size = 0x12000, scoped, tag = 'internal scratch']
  %s0 = inlined_call_operand.vmem [shape: f32[16,16], index: 0, kind: input, shape index: {}]
  %s1 = inlined_call_operand.vmem [shape: f32[16,8], index: 1, kind: input, shape index: {}]
  %s2 = inlined_call_operand.vmem [shape: f32[8,128], index: 2, kind: input, shape index: {}]
  %s3 = inlined_call_operand.vmem [shape: f32[1,128], index: 3, kind: input, shape index: {}]
  %s4 = inlined_call_operand.hbm [shape: f32[2,128,128], index: 4, kind: input, shape index: {}]
  %s5 = inlined_call_operand.vmem [shape: f32[2,1,128], index: 5, kind: input, shape index: {}]
  %s6 = inlined_call_operand.hbm [shape: f32[128,128], index: 6, kind: input, shape index: {}]
  %s7 = inlined_call_operand.vmem [shape: f32[1,128], index: 7, kind: input, shape index: {}]
  %s8 = inlined_call_operand.hbm [shape: f32[1,128], index: 8, kind: output, shape index: {0}]
  %s9 = inlined_call_operand.hbm [shape: f32[1,128], index: 9, kind: output, shape index: {1}]
  %10 = xla_tuple %s8, %s9
  %s11 = sld [smem:[#allocation0]]
  $region58: #{gnn_c_forward.1} parent=0
    _
  %s13 = ssub.s32 1, %s11
  %s14 = scalar_select 0, %s13, %s11
  $region1: #{gnn_c_forward.1} parent=0
    #allocation2 [shape = 'u8[131072]{0}', space=vmem, size = 0x20000, scoped, tag = 'input window, operand 4, single buffered']
    #allocation3 [shape = 's32[1]{0}', space=sflag, size = 0x4, scoped, tag = 'scoped memory for gnn_c_forward.1']
    #allocation4 [shape = 's32[1]{0}', space=sflag, size = 0x4, scoped, tag = 'scoped memory for gnn_c_forward.1']
    #allocation5 [shape = 'u8[65536]{0}', space=vmem, size = 0x10000, scoped, tag = 'input window, operand 6, single buffered']
    #allocation6 [shape = 's32[1]{0}', space=sflag, size = 0x4, scoped, tag = 'scoped memory for gnn_c_forward.1']
    #allocation7 [shape = 'u8[512]{0}', space=vmem, size = 0x400, scoped, tag = 'output window, operand 0, single buffered']
    #allocation8 [shape = 'u8[512]{0}', space=vmem, size = 0x400, scoped, tag = 'output window, operand 1, single buffered']
    #allocation9 [shape = 's32[1]{0}', space=sflag, size = 0x4, scoped, tag = 'scoped memory for gnn_c_forward.1']
    %15 = vsyncpa [#allocation3], 0
    %16 = vsyncpa [#allocation6], 0
    %17 = vsyncpa [#allocation4], 0
    %18 = vsyncpa [#allocation9], 0
    // Predicated region
    $region2: #{gnn_c_forward.1} parent=1 // pred_check
      _
    $region3: #{gnn_c_forward.1} parent=1 // pred_check_branch
      %20 = sbr.rel (0) target = $region5
    $region4: #{gnn_c_forward.1} parent=1 // pred_region
      _
    $region5: #{gnn_c_forward.1} parent=1 // pred_fallthru
      _
    // Predicated region
    $region6: #{gnn_c_forward.1} parent=1 // pred_check
      _
    $region7: #{gnn_c_forward.1} parent=1 // pred_check_branch
      %22 = sbr.rel (0) target = $region9
    $region8: #{gnn_c_forward.1} parent=1 // pred_region
      _
    $region9: #{gnn_c_forward.1} parent=1 // pred_fallthru
      _
    // Predicated region
    $region10: #{gnn_c_forward.1} parent=1 // pred_check
      _
    $region11: #{gnn_c_forward.1} parent=1 // pred_check_branch
      %24 = sbr.rel (0) target = $region13
    $region12: #{gnn_c_forward.1} parent=1 // pred_region
      _
    $region13: #{gnn_c_forward.1} parent=1 // pred_fallthru
      _
    // Predicated region
    $region14: #{gnn_c_forward.1} parent=1 // pred_check
      _
    $region15: #{gnn_c_forward.1} parent=1 // pred_check_branch
      %26 = sbr.rel (0) target = $region17
    $region16: #{gnn_c_forward.1} parent=1 // pred_region
      _
    $region17: #{gnn_c_forward.1} parent=1 // pred_fallthru
      _
    // Predicated region
    $region18: #{gnn_c_forward.1} parent=1 // pred_check
      _
    $region19: #{gnn_c_forward.1} parent=1 // pred_check_branch
      %28 = sbr.rel (0) target = $region21
    $region20: #{gnn_c_forward.1} parent=1 // pred_region
      %s30 = ssub.s32 4096, 4096
      %31 = vsyncadd [#allocation3], %s30
      %s32 = sshll.u32 [#allocation2], 4
      %s33 = int_to_ptr.vmem [resolvable:$true] %s32
      %38 = dma.hbm_to_vmem [thread:$0]  %s4, 4096, %s33, [#allocation3], 128, 128, 8
    $region21: #{gnn_c_forward.1} parent=1 // pred_fallthru
      _
    // Predicated region
    $region22: #{gnn_c_forward.1} parent=1 // pred_check
      _
    $region23: #{gnn_c_forward.1} parent=1 // pred_check_branch
      %40 = sbr.rel (0) target = $region25
    $region24: #{gnn_c_forward.1} parent=1 // pred_region
      _
    $region25: #{gnn_c_forward.1} parent=1 // pred_fallthru
      _
    // Predicated region
    $region26: #{gnn_c_forward.1} parent=1 // pred_check
      _
    $region27: #{gnn_c_forward.1} parent=1 // pred_check_branch
      %42 = sbr.rel (0) target = $region29
    $region28: #{gnn_c_forward.1} parent=1 // pred_region
      %s44 = ssub.s32 2048, 2048
      %45 = vsyncadd [#allocation6], %s44
      %s46 = sshll.u32 [#allocation5], 4
      %s47 = int_to_ptr.vmem [resolvable:$true] %s46
      %52 = dma.hbm_to_vmem [thread:$0]  %s6, 2048, %s47, [#allocation6], 128, 128, 8
    $region29: #{gnn_c_forward.1} parent=1 // pred_fallthru
      _
    // Predicated region
    $region30: #{gnn_c_forward.1} parent=1 // pred_check
      _
    $region31: #{gnn_c_forward.1} parent=1 // pred_check_branch
      %54 = sbr.rel (0) target = $region33
    $region32: #{gnn_c_forward.1} parent=1 // pred_region
      _
    $region33: #{gnn_c_forward.1} parent=1 // pred_fallthru
      _
    // Predicated region
    $region34: #{gnn_c_forward.1} parent=1 // pred_check
      _
    $region35: #{gnn_c_forward.1} parent=1 // pred_check_branch
      %56 = sbr.rel (0) target = $region37
    $region36: #{gnn_c_forward.1} parent=1 // pred_region
      %57 = dma.done [#allocation3], 4096
    $region37: #{gnn_c_forward.1} parent=1 // pred_fallthru
      _
    // Predicated region
    $region38: #{gnn_c_forward.1} parent=1 // pred_check
      _
    $region39: #{gnn_c_forward.1} parent=1 // pred_check_branch
      %59 = sbr.rel (0) target = $region41
    $region40: #{gnn_c_forward.1} parent=1 // pred_region
      %60 = dma.done [#allocation6], 2048
    $region41: #{gnn_c_forward.1} parent=1 // pred_fallthru
      _
    %v61 = vld [vmem:[%s0] sm:$0xff]
    %v62 = vld [vmem:[%s0 + $0x8] sm:$0xff]
    %v63 = vld [vmem:[%s1] sm:$0xff]
    %v64 = vld [vmem:[%s1 + $0x8] sm:$0xff]
    %v65 = vld [vmem:[%s2] sm:$0xff]
    %v66 = vld [vmem:[%s3] sm:$0x1]
    %vm67 = vcmask 64512
    %v69 = vsel %vm67, %v63, 0
    %v72 = vsel %vm67, %v64, 0
    %74 = vmatprep.subr.mxu0 0.0
    %75 = vmatpush1.msra.mxu0 0.0
    %76 = vmatprep.subr.mxu0 0.0
    %77 = vmatpush1.msra.mxu0 0.0
    %78 = vmatprep.subr.mxu0 0.0
    %79 = vmatpush1.msra.mxu0 0.0
    %80 = vmatprep.subr.mxu0 0.0
    %81 = vmatpush1.msra.mxu0 0.0
    %82 = vmatprep.subr.mxu0 0.0
    %83 = vmatpush1.msra.mxu0 0.0
    %84 = vmatprep.subr.mxu0 0.0
    %85 = vmatpush1.msra.mxu0 0.0
    %86 = vmatprep.subr.mxu0 0.0
    %87 = vmatpush1.msra.mxu0 0.0
    %88 = vmatprep.subr.mxu0 0.0
    %89 = vmatpush1.msra.mxu0 0.0
    %90 = vmatprep.subr.mxu0 0.0
    %91 = vmatpush1.msra.mxu0 0.0
    %92 = vmatprep.subr.mxu0 0.0
    %93 = vmatpush1.msra.mxu0 0.0
    %94 = vmatprep.subr.mxu0 0.0
    %95 = vmatpush1.msra.mxu0 0.0
    %96 = vmatprep.subr.mxu0 0.0
    %97 = vmatpush1.msra.mxu0 0.0
    %98 = vmatprep.subr.mxu0 0.0
    %99 = vmatpush1.msra.mxu0 0.0
    %100 = vmatprep.subr.mxu0 0.0
    %101 = vmatpush1.msra.mxu0 0.0
    %102 = vmatprep.subr.mxu0 0.0
    %103 = vmatpush1.msra.mxu0 0.0
    %104 = vmatprep.subr.mxu0 0.0
    %105 = vmatpush1.msra.mxu0 %v65
    %106 = vmatprep.subr.mxu0 0.0
    %107 = vmatpush2.msra.mxu0 0.0
    %108 = vmatprep.subr.mxu0 0.0
    %109 = vmatpush2.msra.mxu0 0.0
    %110 = vmatprep.subr.mxu0 0.0
    %111 = vmatpush2.msra.mxu0 0.0
    %112 = vmatprep.subr.mxu0 0.0
    %113 = vmatpush2.msra.mxu0 0.0
    %114 = vmatprep.subr.mxu0 0.0
    %115 = vmatpush2.msra.mxu0 0.0
    %116 = vmatprep.subr.mxu0 0.0
    %117 = vmatpush2.msra.mxu0 0.0
    %118 = vmatprep.subr.mxu0 0.0
    %119 = vmatpush2.msra.mxu0 0.0
    %120 = vmatprep.subr.mxu0 0.0
    %121 = vmatpush2.msra.mxu0 0.0
    %122 = vmatprep.subr.mxu0 0.0
    %123 = vmatpush2.msra.mxu0 0.0
    %124 = vmatprep.subr.mxu0 0.0
    %125 = vmatpush2.msra.mxu0 0.0
    %126 = vmatprep.subr.mxu0 0.0
    %127 = vmatpush2.msra.mxu0 0.0
    %128 = vmatprep.subr.mxu0 0.0
    %129 = vmatpush2.msra.mxu0 0.0
    %130 = vmatprep.subr.mxu0 0.0
    %131 = vmatpush2.msra.mxu0 0.0
    %132 = vmatprep.subr.mxu0 0.0
    %133 = vmatpush2.msra.mxu0 0.0
    %134 = vmatprep.subr.mxu0 0.0
    %135 = vmatpush2.msra.mxu0 0.0
    %136 = vmatprep.subr.mxu0 0.0
    %137 = vmatpush2.msra.mxu0 0.0
    %138 = vmatprep.mubr.f32.mxu0 0.0
    %139 = vmatmul.mubr.f32.gmra.mxu0 %v69
    %v140 = vpop.f32.mrf.mxu0
    %v141 = vadd.f32 0.0, %v140
    %v142 = vpop.f32.mrf.mxu0
    %143 = vmatprep.mubr.f32.mxu0 0.0
    %144 = vmatmul.mubr.f32.gmra.mxu0 %v72
    %v145 = vpop.f32.mrf.mxu0
    %v146 = vadd.f32 0.0, %v145
    %v147 = vpop.f32.mrf.mxu0
    %148 = vdwg.mxu0
    %v150 = vlaneseq
    %v151 = vshrl.u32 %v150, 7
    %v152 = vsub.s32 0, %v151
    %v153 = vrot.slane %v66, %v152
    %vm155 = vcmask 130048
    %v157 = vsel %vm155, %v61, 0
    %v160 = vsel %vm155, %v62, 0
    %162 = vmatprep.subr.mxu0 0.0
    %163 = vmatpush1.msra.mxu0 0.0
    %164 = vmatprep.subr.mxu0 0.0
    %165 = vmatpush1.msra.mxu0 0.0
    %166 = vmatprep.subr.mxu0 0.0
    %167 = vmatpush1.msra.mxu0 0.0
    %168 = vmatprep.subr.mxu0 0.0
    %169 = vmatpush1.msra.mxu0 0.0
    %170 = vmatprep.subr.mxu0 0.0
    %171 = vmatpush1.msra.mxu0 0.0
    %172 = vmatprep.subr.mxu0 0.0
    %173 = vmatpush1.msra.mxu0 0.0
    %174 = vmatprep.subr.mxu0 0.0
    %175 = vmatpush1.msra.mxu0 0.0
    %176 = vmatprep.subr.mxu0 0.0
    %177 = vmatpush1.msra.mxu0 0.0
    %178 = vmatprep.subr.mxu0 0.0
    %179 = vmatpush1.msra.mxu0 0.0
    %180 = vmatprep.subr.mxu0 0.0
    %181 = vmatpush1.msra.mxu0 0.0
    %182 = vmatprep.subr.mxu0 0.0
    %183 = vmatpush1.msra.mxu0 0.0
    %184 = vmatprep.subr.mxu0 0.0
    %185 = vmatpush1.msra.mxu0 0.0
    %186 = vmatprep.subr.mxu0 0.0
    %187 = vmatpush1.msra.mxu0 0.0
    %188 = vmatprep.subr.mxu0 0.0
    %189 = vmatpush1.msra.mxu0 0.0
    %190 = vmatprep.subr.mxu0 0.0
    %191 = vmatpush1.msra.mxu0 %v146
    %192 = vmatprep.subr.mxu0 0.0
    %193 = vmatpush1.msra.mxu0 %v141
    %194 = vmatprep.subr.mxu0 0.0
    %195 = vmatpush2.msra.mxu0 0.0
    %196 = vmatprep.subr.mxu0 0.0
    %197 = vmatpush2.msra.mxu0 0.0
    %198 = vmatprep.subr.mxu0 0.0
    %199 = vmatpush2.msra.mxu0 0.0
    %200 = vmatprep.subr.mxu0 0.0
    %201 = vmatpush2.msra.mxu0 0.0
    %202 = vmatprep.subr.mxu0 0.0
    %203 = vmatpush2.msra.mxu0 0.0
    %204 = vmatprep.subr.mxu0 0.0
    %205 = vmatpush2.msra.mxu0 0.0
    %206 = vmatprep.subr.mxu0 0.0
    %207 = vmatpush2.msra.mxu0 0.0
    %208 = vmatprep.subr.mxu0 0.0
    %209 = vmatpush2.msra.mxu0 0.0
    %210 = vmatprep.subr.mxu0 0.0
    %211 = vmatpush2.msra.mxu0 0.0
    %212 = vmatprep.subr.mxu0 0.0
    %213 = vmatpush2.msra.mxu0 0.0
    %214 = vmatprep.subr.mxu0 0.0
    %215 = vmatpush2.msra.mxu0 0.0
    %216 = vmatprep.subr.mxu0 0.0
    %217 = vmatpush2.msra.mxu0 0.0
    %218 = vmatprep.subr.mxu0 0.0
    %219 = vmatpush2.msra.mxu0 0.0
    %220 = vmatprep.subr.mxu0 0.0
    %221 = vmatpush2.msra.mxu0 0.0
    %222 = vmatprep.subr.mxu0 0.0
    %223 = vmatpush2.msra.mxu0 0.0
    %224 = vmatprep.subr.mxu0 0.0
    %225 = vmatpush2.msra.mxu0 0.0
    %226 = vmatprep.mubr.f32.mxu0 0.0
    %227 = vmatmul.mubr.f32.gmra.mxu0 %v157
    %v228 = vpop.f32.mrf.mxu0
    %v229 = vadd.f32 %v153, %v228
    %v230 = vpop.f32.mrf.mxu0
    %231 = vmatprep.mubr.f32.mxu0 0.0
    %232 = vmatmul.mubr.f32.gmra.mxu0 %v160
    %v233 = vpop.f32.mrf.mxu0
    %v234 = vadd.f32 %v153, %v233
    %v235 = vpop.f32.mrf.mxu0
    %236 = vdwg.mxu0
    %237 = vadd.xlane.f32.xlu0 %v229
    %v238 = vpop.xlane.xlu0 %237
    %239 = vadd.xlane.f32.xlu0 %v234
    %v240 = vpop.xlane.xlu0 %239
    %v241 = vrcp.pop 128.0
    %v242 = vmul.f32 %v238, %v241
    %v243 = vmul.f32 %v240, %v241
    %v244 = vsub.f32 %v229, %v242
    %v245 = vsub.f32 %v234, %v243
    %v246 = vmul.f32 %v244, %v244
    %v247 = vmul.f32 %v245, %v245
    %248 = vadd.xlane.f32.xlu0 %v246
    %v249 = vpop.xlane.xlu0 %248
    %250 = vadd.xlane.f32.xlu0 %v247
    %v251 = vpop.xlane.xlu0 %250
    %v252 = vrcp.pop 127.0
    %v253 = vmul.f32 %v249, %v252
    %v254 = vmul.f32 %v251, %v252
    %v255 = vrsqrt.pop %v253
    %v256 = vmul.f32 %v253, %v255
    %vm257 = vcmp.eq.f32.partialorder %v253, inf
    %v258 = vsel %vm257, %v253, %v256
    %vm259 = vcmp.eq.f32.partialorder %v253, 0.0
    %v260 = vand.u32 %v253, 2147483648
    %v261 = vsel %vm259, %v260, %v258
    %v262 = vrsqrt.pop %v254
    %v263 = vmul.f32 %v254, %v262
    %vm264 = vcmp.eq.f32.partialorder %v254, inf
    %v265 = vsel %vm264, %v254, %v263
    %vm266 = vcmp.eq.f32.partialorder %v254, 0.0
    %v267 = vand.u32 %v254, 2147483648
    %v268 = vsel %vm266, %v267, %v265
    %v269 = vadd.f32 %v261, 1e-05
    %v270 = vadd.f32 %v268, 1e-05
    %v271 = vrcp.pop %v269
    %v272 = vmul.f32 %v244, %v271
    %v273 = vrcp.pop %v270
    %v274 = vmul.f32 %v245, %v273
    %vm275 = vcmp.gt.f32.partialorder %v272, 0.0
    %vm276 = vcmp.gt.f32.partialorder %v274, 0.0
    %v277 = vmin.f32 %v272, 0.0
    %v278 = vmin.f32 %v274, 0.0
    %v279 = vmul.f32 %v277, 1.442695
    %v280 = vpow.pop %v279
    %v281 = vmul.f32 %v278, 1.442695
    %v282 = vpow.pop %v281
    %v283 = vsub.f32 %v280, 1.0
    %v284 = vsub.f32 %v282, 1.0
    %v285 = vsel %vm275, %v272, %v283
    %v286 = vsel %vm276, %v274, %v284
    %v287 = vld [vmem:[#allocation2] sm:$0xff]
    %v288 = vld [vmem:[#allocation2 + $0x8] sm:$0xff]
    %v289 = vld [vmem:[#allocation2 + $0x10] sm:$0xff]
    %v290 = vld [vmem:[#allocation2 + $0x18] sm:$0xff]
    %v291 = vld [vmem:[#allocation2 + $0x20] sm:$0xff]
    %v292 = vld [vmem:[#allocation2 + $0x28] sm:$0xff]
    %v293 = vld [vmem:[#allocation2 + $0x30] sm:$0xff]
    %v294 = vld [vmem:[#allocation2 + $0x38] sm:$0xff]
    %v295 = vld [vmem:[#allocation2 + $0x40] sm:$0xff]
    %v296 = vld [vmem:[#allocation2 + $0x48] sm:$0xff]
    %v297 = vld [vmem:[#allocation2 + $0x50] sm:$0xff]
    %v298 = vld [vmem:[#allocation2 + $0x58] sm:$0xff]
    %v299 = vld [vmem:[#allocation2 + $0x60] sm:$0xff]
    %v300 = vld [vmem:[#allocation2 + $0x68] sm:$0xff]
    %v301 = vld [vmem:[#allocation2 + $0x70] sm:$0xff]
    %v302 = vld [vmem:[#allocation2 + $0x78] sm:$0xff]
    %v303 = vld [vmem:[%s5] sm:$0x1]
    %304 = vmatprep.subr.mxu0 0.0
    %305 = vmatpush1.msra.mxu0 %v302
    %306 = vmatprep.subr.mxu0 0.0
    %307 = vmatpush1.msra.mxu0 %v301
    %308 = vmatprep.subr.mxu0 0.0
    %309 = vmatpush1.msra.mxu0 %v300
    %310 = vmatprep.subr.mxu0 0.0
    %311 = vmatpush1.msra.mxu0 %v299
    %312 = vmatprep.subr.mxu0 0.0
    %313 = vmatpush1.msra.mxu0 %v298
    %314 = vmatprep.subr.mxu0 0.0
    %315 = vmatpush1.msra.mxu0 %v297
    %316 = vmatprep.subr.mxu0 0.0
    %317 = vmatpush1.msra.mxu0 %v296
    %318 = vmatprep.subr.mxu0 0.0
    %319 = vmatpush1.msra.mxu0 %v295
    %320 = vmatprep.subr.mxu0 0.0
    %321 = vmatpush1.msra.mxu0 %v294
    %322 = vmatprep.subr.mxu0 0.0
    %323 = vmatpush1.msra.mxu0 %v293
    %324 = vmatprep.subr.mxu0 0.0
    %325 = vmatpush1.msra.mxu0 %v292
    %326 = vmatprep.subr.mxu0 0.0
    %327 = vmatpush1.msra.mxu0 %v291
    %328 = vmatprep.subr.mxu0 0.0
    %329 = vmatpush1.msra.mxu0 %v290
    %330 = vmatprep.subr.mxu0 0.0
    %331 = vmatpush1.msra.mxu0 %v289
    %332 = vmatprep.subr.mxu0 0.0
    %333 = vmatpush1.msra.mxu0 %v288
    %334 = vmatprep.subr.mxu0 0.0
    %335 = vmatpush1.msra.mxu0 %v287
    %336 = vmatprep.subr.mxu0 0.0
    %337 = vmatpush2.msra.mxu0 0.0
    %338 = vmatprep.subr.mxu0 0.0
    %339 = vmatpush2.msra.mxu0 0.0
    %340 = vmatprep.subr.mxu0 0.0
    %341 = vmatpush2.msra.mxu0 0.0
    %342 = vmatprep.subr.mxu0 0.0
    %343 = vmatpush2.msra.mxu0 0.0
    %344 = vmatprep.subr.mxu0 0.0
    %345 = vmatpush2.msra.mxu0 0.0
    %346 = vmatprep.subr.mxu0 0.0
    %347 = vmatpush2.msra.mxu0 0.0
    %348 = vmatprep.subr.mxu0 0.0
    %349 = vmatpush2.msra.mxu0 0.0
    %350 = vmatprep.subr.mxu0 0.0
    %351 = vmatpush2.msra.mxu0 0.0
    %352 = vmatprep.subr.mxu0 0.0
    %353 = vmatpush2.msra.mxu0 0.0
    %354 = vmatprep.subr.mxu0 0.0
    %355 = vmatpush2.msra.mxu0 0.0
    %356 = vmatprep.subr.mxu0 0.0
    %357 = vmatpush2.msra.mxu0 0.0
    %358 = vmatprep.subr.mxu0 0.0
    %359 = vmatpush2.msra.mxu0 0.0
    %360 = vmatprep.subr.mxu0 0.0
    %361 = vmatpush2.msra.mxu0 0.0
    %362 = vmatprep.subr.mxu0 0.0
    %363 = vmatpush2.msra.mxu0 0.0
    %364 = vmatprep.subr.mxu0 0.0
    %365 = vmatpush2.msra.mxu0 0.0
    %366 = vmatprep.subr.mxu0 0.0
    %367 = vmatpush2.msra.mxu0 0.0
    %368 = vmatprep.mubr.f32.mxu0 0.0
    %369 = vmatmul.mubr.f32.gmra.mxu0 %v285
    %v370 = vpop.f32.mrf.mxu0
    %v371 = vadd.f32 0.0, %v370
    %v372 = vpop.f32.mrf.mxu0
    %373 = vmatprep.mubr.f32.mxu0 0.0
    %374 = vmatmul.mubr.f32.gmra.mxu0 %v286
    %v375 = vpop.f32.mrf.mxu0
    %v376 = vadd.f32 0.0, %v375
    %v377 = vpop.f32.mrf.mxu0
    %378 = vdwg.mxu0
    %v380 = vlaneseq
    %v381 = vshrl.u32 %v380, 7
    %v382 = vsub.s32 0, %v381
    %v383 = vrot.slane %v303, %v382
    %385 = vmatprep.subr.mxu0 0.0
    %386 = vmatpush1.msra.mxu0 0.0
    %387 = vmatprep.subr.mxu0 0.0
    %388 = vmatpush1.msra.mxu0 0.0
    %389 = vmatprep.subr.mxu0 0.0
    %390 = vmatpush1.msra.mxu0 0.0
    %391 = vmatprep.subr.mxu0 0.0
    %392 = vmatpush1.msra.mxu0 0.0
    %393 = vmatprep.subr.mxu0 0.0
    %394 = vmatpush1.msra.mxu0 0.0
    %395 = vmatprep.subr.mxu0 0.0
    %396 = vmatpush1.msra.mxu0 0.0
    %397 = vmatprep.subr.mxu0 0.0
    %398 = vmatpush1.msra.mxu0 0.0
    %399 = vmatprep.subr.mxu0 0.0
    %400 = vmatpush1.msra.mxu0 0.0
    %401 = vmatprep.subr.mxu0 0.0
    %402 = vmatpush1.msra.mxu0 0.0
    %403 = vmatprep.subr.mxu0 0.0
    %404 = vmatpush1.msra.mxu0 0.0
    %405 = vmatprep.subr.mxu0 0.0
    %406 = vmatpush1.msra.mxu0 0.0
    %407 = vmatprep.subr.mxu0 0.0
    %408 = vmatpush1.msra.mxu0 0.0
    %409 = vmatprep.subr.mxu0 0.0
    %410 = vmatpush1.msra.mxu0 0.0
    %411 = vmatprep.subr.mxu0 0.0
    %412 = vmatpush1.msra.mxu0 0.0
    %413 = vmatprep.subr.mxu0 0.0
    %414 = vmatpush1.msra.mxu0 %v376
    %415 = vmatprep.subr.mxu0 0.0
    %416 = vmatpush1.msra.mxu0 %v371
    %417 = vmatprep.subr.mxu0 0.0
    %418 = vmatpush2.msra.mxu0 0.0
    %419 = vmatprep.subr.mxu0 0.0
    %420 = vmatpush2.msra.mxu0 0.0
    %421 = vmatprep.subr.mxu0 0.0
    %422 = vmatpush2.msra.mxu0 0.0
    %423 = vmatprep.subr.mxu0 0.0
    %424 = vmatpush2.msra.mxu0 0.0
    %425 = vmatprep.subr.mxu0 0.0
    %426 = vmatpush2.msra.mxu0 0.0
    %427 = vmatprep.subr.mxu0 0.0
    %428 = vmatpush2.msra.mxu0 0.0
    %429 = vmatprep.subr.mxu0 0.0
    %430 = vmatpush2.msra.mxu0 0.0
    %431 = vmatprep.subr.mxu0 0.0
    %432 = vmatpush2.msra.mxu0 0.0
    %433 = vmatprep.subr.mxu0 0.0
    %434 = vmatpush2.msra.mxu0 0.0
    %435 = vmatprep.subr.mxu0 0.0
    %436 = vmatpush2.msra.mxu0 0.0
    %437 = vmatprep.subr.mxu0 0.0
    %438 = vmatpush2.msra.mxu0 0.0
    %439 = vmatprep.subr.mxu0 0.0
    %440 = vmatpush2.msra.mxu0 0.0
    %441 = vmatprep.subr.mxu0 0.0
    %442 = vmatpush2.msra.mxu0 0.0
    %443 = vmatprep.subr.mxu0 0.0
    %444 = vmatpush2.msra.mxu0 0.0
    %445 = vmatprep.subr.mxu0 0.0
    %446 = vmatpush2.msra.mxu0 0.0
    %447 = vmatprep.subr.mxu0 0.0
    %448 = vmatpush2.msra.mxu0 0.0
    %449 = vmatprep.mubr.f32.mxu0 0.0
    %450 = vmatmul.mubr.f32.gmra.mxu0 %v157
    %v451 = vpop.f32.mrf.mxu0
    %v452 = vadd.f32 %v383, %v451
    %v453 = vpop.f32.mrf.mxu0
    %454 = vmatprep.mubr.f32.mxu0 0.0
    %455 = vmatmul.mubr.f32.gmra.mxu0 %v160
    %v456 = vpop.f32.mrf.mxu0
    %v457 = vadd.f32 %v383, %v456
    %v458 = vpop.f32.mrf.mxu0
    %459 = vdwg.mxu0
    %460 = vadd.xlane.f32.xlu0 %v452
    %v461 = vpop.xlane.xlu0 %460
    %462 = vadd.xlane.f32.xlu0 %v457
    %v463 = vpop.xlane.xlu0 %462
    %v464 = vmul.f32 %v461, %v241
    %v465 = vmul.f32 %v463, %v241
    %v466 = vsub.f32 %v452, %v464
    %v467 = vsub.f32 %v457, %v465
    %v468 = vmul.f32 %v466, %v466
    %v469 = vmul.f32 %v467, %v467
    %470 = vadd.xlane.f32.xlu0 %v468
    %v471 = vpop.xlane.xlu0 %470
    %472 = vadd.xlane.f32.xlu0 %v469
    %v473 = vpop.xlane.xlu0 %472
    %v474 = vmul.f32 %v471, %v252
    %v475 = vmul.f32 %v473, %v252
    %v476 = vrsqrt.pop %v474
    %v477 = vmul.f32 %v474, %v476
    %vm478 = vcmp.eq.f32.partialorder %v474, inf
    %v479 = vsel %vm478, %v474, %v477
    %vm480 = vcmp.eq.f32.partialorder %v474, 0.0
    %v481 = vand.u32 %v474, 2147483648
    %v482 = vsel %vm480, %v481, %v479
    %v483 = vrsqrt.pop %v475
    %v484 = vmul.f32 %v475, %v483
    %vm485 = vcmp.eq.f32.partialorder %v475, inf
    %v486 = vsel %vm485, %v475, %v484
    %vm487 = vcmp.eq.f32.partialorder %v475, 0.0
    %v488 = vand.u32 %v475, 2147483648
    %v489 = vsel %vm487, %v488, %v486
    %v490 = vadd.f32 %v482, 1e-05
    %v491 = vadd.f32 %v489, 1e-05
    %v492 = vrcp.pop %v490
    %v493 = vmul.f32 %v466, %v492
    %v494 = vrcp.pop %v491
    %v495 = vmul.f32 %v467, %v494
    %vm496 = vcmp.gt.f32.partialorder %v493, 0.0
    %vm497 = vcmp.gt.f32.partialorder %v495, 0.0
    %v498 = vmin.f32 %v493, 0.0
    %v499 = vmin.f32 %v495, 0.0
    %v500 = vmul.f32 %v498, 1.442695
    %v501 = vpow.pop %v500
    %v502 = vmul.f32 %v499, 1.442695
    %v503 = vpow.pop %v502
    %v504 = vsub.f32 %v501, 1.0
    %v505 = vsub.f32 %v503, 1.0
    %v506 = vsel %vm496, %v493, %v504
    %v507 = vsel %vm497, %v495, %v505
    %s508 = scalar_lea.vmem [#allocation2], 128
    %v509 = vld [vmem:[%s508] sm:$0xff]
    %v510 = vld [vmem:[%s508 + $0x8] sm:$0xff]
    %v511 = vld [vmem:[%s508 + $0x10] sm:$0xff]
    %v512 = vld [vmem:[%s508 + $0x18] sm:$0xff]
    %v513 = vld [vmem:[%s508 + $0x20] sm:$0xff]
    %v514 = vld [vmem:[%s508 + $0x28] sm:$0xff]
    %v515 = vld [vmem:[%s508 + $0x30] sm:$0xff]
    %v516 = vld [vmem:[%s508 + $0x38] sm:$0xff]
    %v517 = vld [vmem:[%s508 + $0x40] sm:$0xff]
    %v518 = vld [vmem:[%s508 + $0x48] sm:$0xff]
    %v519 = vld [vmem:[%s508 + $0x50] sm:$0xff]
    %v520 = vld [vmem:[%s508 + $0x58] sm:$0xff]
    %v521 = vld [vmem:[%s508 + $0x60] sm:$0xff]
    %v522 = vld [vmem:[%s508 + $0x68] sm:$0xff]
    %v523 = vld [vmem:[%s508 + $0x70] sm:$0xff]
    %v524 = vld [vmem:[%s508 + $0x78] sm:$0xff]
    %s525 = scalar_lea.vmem %s5, 1
    %v526 = vld [vmem:[%s525] sm:$0x1]
    %527 = vmatprep.subr.mxu0 0.0
    %528 = vmatpush1.msra.mxu0 %v524
    %529 = vmatprep.subr.mxu0 0.0
    %530 = vmatpush1.msra.mxu0 %v523
    %531 = vmatprep.subr.mxu0 0.0
    %532 = vmatpush1.msra.mxu0 %v522
    %533 = vmatprep.subr.mxu0 0.0
    %534 = vmatpush1.msra.mxu0 %v521
    %535 = vmatprep.subr.mxu0 0.0
    %536 = vmatpush1.msra.mxu0 %v520
    %537 = vmatprep.subr.mxu0 0.0
    %538 = vmatpush1.msra.mxu0 %v519
    %539 = vmatprep.subr.mxu0 0.0
    %540 = vmatpush1.msra.mxu0 %v518
    %541 = vmatprep.subr.mxu0 0.0
    %542 = vmatpush1.msra.mxu0 %v517
    %543 = vmatprep.subr.mxu0 0.0
    %544 = vmatpush1.msra.mxu0 %v516
    %545 = vmatprep.subr.mxu0 0.0
    %546 = vmatpush1.msra.mxu0 %v515
    %547 = vmatprep.subr.mxu0 0.0
    %548 = vmatpush1.msra.mxu0 %v514
    %549 = vmatprep.subr.mxu0 0.0
    %550 = vmatpush1.msra.mxu0 %v513
    %551 = vmatprep.subr.mxu0 0.0
    %552 = vmatpush1.msra.mxu0 %v512
    %553 = vmatprep.subr.mxu0 0.0
    %554 = vmatpush1.msra.mxu0 %v511
    %555 = vmatprep.subr.mxu0 0.0
    %556 = vmatpush1.msra.mxu0 %v510
    %557 = vmatprep.subr.mxu0 0.0
    %558 = vmatpush1.msra.mxu0 %v509
    %559 = vmatprep.subr.mxu0 0.0
    %560 = vmatpush2.msra.mxu0 0.0
    %561 = vmatprep.subr.mxu0 0.0
    %562 = vmatpush2.msra.mxu0 0.0
    %563 = vmatprep.subr.mxu0 0.0
    %564 = vmatpush2.msra.mxu0 0.0
    %565 = vmatprep.subr.mxu0 0.0
    %566 = vmatpush2.msra.mxu0 0.0
    %567 = vmatprep.subr.mxu0 0.0
    %568 = vmatpush2.msra.mxu0 0.0
    %569 = vmatprep.subr.mxu0 0.0
    %570 = vmatpush2.msra.mxu0 0.0
    %571 = vmatprep.subr.mxu0 0.0
    %572 = vmatpush2.msra.mxu0 0.0
    %573 = vmatprep.subr.mxu0 0.0
    %574 = vmatpush2.msra.mxu0 0.0
    %575 = vmatprep.subr.mxu0 0.0
    %576 = vmatpush2.msra.mxu0 0.0
    %577 = vmatprep.subr.mxu0 0.0
    %578 = vmatpush2.msra.mxu0 0.0
    %579 = vmatprep.subr.mxu0 0.0
    %580 = vmatpush2.msra.mxu0 0.0
    %581 = vmatprep.subr.mxu0 0.0
    %582 = vmatpush2.msra.mxu0 0.0
    %583 = vmatprep.subr.mxu0 0.0
    %584 = vmatpush2.msra.mxu0 0.0
    %585 = vmatprep.subr.mxu0 0.0
    %586 = vmatpush2.msra.mxu0 0.0
    %587 = vmatprep.subr.mxu0 0.0
    %588 = vmatpush2.msra.mxu0 0.0
    %589 = vmatprep.subr.mxu0 0.0
    %590 = vmatpush2.msra.mxu0 0.0
    %591 = vmatprep.mubr.f32.mxu0 0.0
    %592 = vmatmul.mubr.f32.gmra.mxu0 %v506
    %v593 = vpop.f32.mrf.mxu0
    %v594 = vadd.f32 0.0, %v593
    %v595 = vpop.f32.mrf.mxu0
    %596 = vmatprep.mubr.f32.mxu0 0.0
    %597 = vmatmul.mubr.f32.gmra.mxu0 %v507
    %v598 = vpop.f32.mrf.mxu0
    %v599 = vadd.f32 0.0, %v598
    %v600 = vpop.f32.mrf.mxu0
    %601 = vdwg.mxu0
    %v603 = vlaneseq
    %v604 = vshrl.u32 %v603, 7
    %v605 = vsub.s32 0, %v604
    %v606 = vrot.slane %v526, %v605
    %608 = vmatprep.subr.mxu0 0.0
    %609 = vmatpush1.msra.mxu0 0.0
    %610 = vmatprep.subr.mxu0 0.0
    %611 = vmatpush1.msra.mxu0 0.0
    %612 = vmatprep.subr.mxu0 0.0
    %613 = vmatpush1.msra.mxu0 0.0
    %614 = vmatprep.subr.mxu0 0.0
    %615 = vmatpush1.msra.mxu0 0.0
    %616 = vmatprep.subr.mxu0 0.0
    %617 = vmatpush1.msra.mxu0 0.0
    %618 = vmatprep.subr.mxu0 0.0
    %619 = vmatpush1.msra.mxu0 0.0
    %620 = vmatprep.subr.mxu0 0.0
    %621 = vmatpush1.msra.mxu0 0.0
    %622 = vmatprep.subr.mxu0 0.0
    %623 = vmatpush1.msra.mxu0 0.0
    %624 = vmatprep.subr.mxu0 0.0
    %625 = vmatpush1.msra.mxu0 0.0
    %626 = vmatprep.subr.mxu0 0.0
    %627 = vmatpush1.msra.mxu0 0.0
    %628 = vmatprep.subr.mxu0 0.0
    %629 = vmatpush1.msra.mxu0 0.0
    %630 = vmatprep.subr.mxu0 0.0
    %631 = vmatpush1.msra.mxu0 0.0
    %632 = vmatprep.subr.mxu0 0.0
    %633 = vmatpush1.msra.mxu0 0.0
    %634 = vmatprep.subr.mxu0 0.0
    %635 = vmatpush1.msra.mxu0 0.0
    %636 = vmatprep.subr.mxu0 0.0
    %637 = vmatpush1.msra.mxu0 %v599
    %638 = vmatprep.subr.mxu0 0.0
    %639 = vmatpush1.msra.mxu0 %v594
    %640 = vmatprep.subr.mxu0 0.0
    %641 = vmatpush2.msra.mxu0 0.0
    %642 = vmatprep.subr.mxu0 0.0
    %643 = vmatpush2.msra.mxu0 0.0
    %644 = vmatprep.subr.mxu0 0.0
    %645 = vmatpush2.msra.mxu0 0.0
    %646 = vmatprep.subr.mxu0 0.0
    %647 = vmatpush2.msra.mxu0 0.0
    %648 = vmatprep.subr.mxu0 0.0
    %649 = vmatpush2.msra.mxu0 0.0
    %650 = vmatprep.subr.mxu0 0.0
    %651 = vmatpush2.msra.mxu0 0.0
    %652 = vmatprep.subr.mxu0 0.0
    %653 = vmatpush2.msra.mxu0 0.0
    %654 = vmatprep.subr.mxu0 0.0
    %655 = vmatpush2.msra.mxu0 0.0
    %656 = vmatprep.subr.mxu0 0.0
    %657 = vmatpush2.msra.mxu0 0.0
    %658 = vmatprep.subr.mxu0 0.0
    %659 = vmatpush2.msra.mxu0 0.0
    %660 = vmatprep.subr.mxu0 0.0
    %661 = vmatpush2.msra.mxu0 0.0
    %662 = vmatprep.subr.mxu0 0.0
    %663 = vmatpush2.msra.mxu0 0.0
    %664 = vmatprep.subr.mxu0 0.0
    %665 = vmatpush2.msra.mxu0 0.0
    %666 = vmatprep.subr.mxu0 0.0
    %667 = vmatpush2.msra.mxu0 0.0
    %668 = vmatprep.subr.mxu0 0.0
    %669 = vmatpush2.msra.mxu0 0.0
    %670 = vmatprep.subr.mxu0 0.0
    %671 = vmatpush2.msra.mxu0 0.0
    %672 = vmatprep.mubr.f32.mxu0 0.0
    %673 = vmatmul.mubr.f32.gmra.mxu0 %v157
    %v674 = vpop.f32.mrf.mxu0
    %v675 = vadd.f32 %v606, %v674
    %v676 = vpop.f32.mrf.mxu0
    %677 = vmatprep.mubr.f32.mxu0 0.0
    %678 = vmatmul.mubr.f32.gmra.mxu0 %v160
    %v679 = vpop.f32.mrf.mxu0
    %v680 = vadd.f32 %v606, %v679
    %v681 = vpop.f32.mrf.mxu0
    %682 = vdwg.mxu0
    %683 = vadd.xlane.f32.xlu0 %v675
    %v684 = vpop.xlane.xlu0 %683
    %685 = vadd.xlane.f32.xlu0 %v680
    %v686 = vpop.xlane.xlu0 %685
    %v687 = vmul.f32 %v684, %v241
    %v688 = vmul.f32 %v686, %v241
    %v689 = vsub.f32 %v675, %v687
    %v690 = vsub.f32 %v680, %v688
    %v691 = vmul.f32 %v689, %v689
    %v692 = vmul.f32 %v690, %v690
    %693 = vadd.xlane.f32.xlu0 %v691
    %v694 = vpop.xlane.xlu0 %693
    %695 = vadd.xlane.f32.xlu0 %v692
    %v696 = vpop.xlane.xlu0 %695
    %v697 = vmul.f32 %v694, %v252
    %v698 = vmul.f32 %v696, %v252
    %v699 = vrsqrt.pop %v697
    %v700 = vmul.f32 %v697, %v699
    %vm701 = vcmp.eq.f32.partialorder %v697, inf
    %v702 = vsel %vm701, %v697, %v700
    %vm703 = vcmp.eq.f32.partialorder %v697, 0.0
    %v704 = vand.u32 %v697, 2147483648
    %v705 = vsel %vm703, %v704, %v702
    %v706 = vrsqrt.pop %v698
    %v707 = vmul.f32 %v698, %v706
    %vm708 = vcmp.eq.f32.partialorder %v698, inf
    %v709 = vsel %vm708, %v698, %v707
    %vm710 = vcmp.eq.f32.partialorder %v698, 0.0
    %v711 = vand.u32 %v698, 2147483648
    %v712 = vsel %vm710, %v711, %v709
    %v713 = vadd.f32 %v705, 1e-05
    %v714 = vadd.f32 %v712, 1e-05
    %v715 = vrcp.pop %v713
    %v716 = vmul.f32 %v689, %v715
    %v717 = vrcp.pop %v714
    %v718 = vmul.f32 %v690, %v717
    %vm719 = vcmp.gt.f32.partialorder %v716, 0.0
    %vm720 = vcmp.gt.f32.partialorder %v718, 0.0
    %v721 = vmin.f32 %v716, 0.0
    %v722 = vmin.f32 %v718, 0.0
    %v723 = vmul.f32 %v721, 1.442695
    %v724 = vpow.pop %v723
    %v725 = vmul.f32 %v722, 1.442695
    %v726 = vpow.pop %v725
    %v727 = vsub.f32 %v724, 1.0
    %v728 = vsub.f32 %v726, 1.0
    %v729 = vsel %vm719, %v716, %v727
    %v730 = vsel %vm720, %v718, %v728
    %v731 = vld [vmem:[#allocation5] sm:$0xff]
    %v732 = vld [vmem:[#allocation5 + $0x8] sm:$0xff]
    %v733 = vld [vmem:[#allocation5 + $0x10] sm:$0xff]
    %v734 = vld [vmem:[#allocation5 + $0x18] sm:$0xff]
    %v735 = vld [vmem:[#allocation5 + $0x20] sm:$0xff]
    %v736 = vld [vmem:[#allocation5 + $0x28] sm:$0xff]
    %v737 = vld [vmem:[#allocation5 + $0x30] sm:$0xff]
    %v738 = vld [vmem:[#allocation5 + $0x38] sm:$0xff]
    %v739 = vld [vmem:[#allocation5 + $0x40] sm:$0xff]
    %v740 = vld [vmem:[#allocation5 + $0x48] sm:$0xff]
    %v741 = vld [vmem:[#allocation5 + $0x50] sm:$0xff]
    %v742 = vld [vmem:[#allocation5 + $0x58] sm:$0xff]
    %v743 = vld [vmem:[#allocation5 + $0x60] sm:$0xff]
    %v744 = vld [vmem:[#allocation5 + $0x68] sm:$0xff]
    %v745 = vld [vmem:[#allocation5 + $0x70] sm:$0xff]
    %v746 = vld [vmem:[#allocation5 + $0x78] sm:$0xff]
    %v747 = vld [vmem:[%s7] sm:$0x1]
    %748 = vmatprep.subr.mxu0 0.0
    %749 = vmatpush1.msra.mxu0 %v746
    %750 = vmatprep.subr.mxu0 0.0
    %751 = vmatpush1.msra.mxu0 %v745
    %752 = vmatprep.subr.mxu0 0.0
    %753 = vmatpush1.msra.mxu0 %v744
    %754 = vmatprep.subr.mxu0 0.0
    %755 = vmatpush1.msra.mxu0 %v743
    %756 = vmatprep.subr.mxu0 0.0
    %757 = vmatpush1.msra.mxu0 %v742
    %758 = vmatprep.subr.mxu0 0.0
    %759 = vmatpush1.msra.mxu0 %v741
    %760 = vmatprep.subr.mxu0 0.0
    %761 = vmatpush1.msra.mxu0 %v740
    %762 = vmatprep.subr.mxu0 0.0
    %763 = vmatpush1.msra.mxu0 %v739
    %764 = vmatprep.subr.mxu0 0.0
    %765 = vmatpush1.msra.mxu0 %v738
    %766 = vmatprep.subr.mxu0 0.0
    %767 = vmatpush1.msra.mxu0 %v737
    %768 = vmatprep.subr.mxu0 0.0
    %769 = vmatpush1.msra.mxu0 %v736
    %770 = vmatprep.subr.mxu0 0.0
    %771 = vmatpush1.msra.mxu0 %v735
    %772 = vmatprep.subr.mxu0 0.0
    %773 = vmatpush1.msra.mxu0 %v734
    %774 = vmatprep.subr.mxu0 0.0
    %775 = vmatpush1.msra.mxu0 %v733
    %776 = vmatprep.subr.mxu0 0.0
    %777 = vmatpush1.msra.mxu0 %v732
    %778 = vmatprep.subr.mxu0 0.0
    %779 = vmatpush1.msra.mxu0 %v731
    %780 = vmatprep.subr.mxu0 0.0
    %781 = vmatpush2.msra.mxu0 0.0
    %782 = vmatprep.subr.mxu0 0.0
    %783 = vmatpush2.msra.mxu0 0.0
    %784 = vmatprep.subr.mxu0 0.0
    %785 = vmatpush2.msra.mxu0 0.0
    %786 = vmatprep.subr.mxu0 0.0
    %787 = vmatpush2.msra.mxu0 0.0
    %788 = vmatprep.subr.mxu0 0.0
    %789 = vmatpush2.msra.mxu0 0.0
    %790 = vmatprep.subr.mxu0 0.0
    %791 = vmatpush2.msra.mxu0 0.0
    %792 = vmatprep.subr.mxu0 0.0
    %793 = vmatpush2.msra.mxu0 0.0
    %794 = vmatprep.subr.mxu0 0.0
    %795 = vmatpush2.msra.mxu0 0.0
    %796 = vmatprep.subr.mxu0 0.0
    %797 = vmatpush2.msra.mxu0 0.0
    %798 = vmatprep.subr.mxu0 0.0
    %799 = vmatpush2.msra.mxu0 0.0
    %800 = vmatprep.subr.mxu0 0.0
    %801 = vmatpush2.msra.mxu0 0.0
    %802 = vmatprep.subr.mxu0 0.0
    %803 = vmatpush2.msra.mxu0 0.0
    %804 = vmatprep.subr.mxu0 0.0
    %805 = vmatpush2.msra.mxu0 0.0
    %806 = vmatprep.subr.mxu0 0.0
    %807 = vmatpush2.msra.mxu0 0.0
    %808 = vmatprep.subr.mxu0 0.0
    %809 = vmatpush2.msra.mxu0 0.0
    %810 = vmatprep.subr.mxu0 0.0
    %811 = vmatpush2.msra.mxu0 0.0
    %812 = vmatprep.mubr.f32.mxu0 0.0
    %813 = vmatmul.mubr.f32.gmra.mxu0 %v729
    %v814 = vpop.f32.mrf.mxu0
    %v815 = vadd.f32 0.0, %v814
    %v816 = vpop.f32.mrf.mxu0
    %817 = vmatprep.mubr.f32.mxu0 0.0
    %818 = vmatmul.mubr.f32.gmra.mxu0 %v730
    %v819 = vpop.f32.mrf.mxu0
    %v820 = vadd.f32 0.0, %v819
    %v821 = vpop.f32.mrf.mxu0
    %822 = vdwg.mxu0
    %v824 = vlaneseq
    %v825 = vshrl.u32 %v824, 7
    %v826 = vsub.s32 0, %v825
    %v827 = vrot.slane %v747, %v826
    %829 = vmatprep.subr.mxu0 0.0
    %830 = vmatpush1.msra.mxu0 0.0
    %831 = vmatprep.subr.mxu0 0.0
    %832 = vmatpush1.msra.mxu0 0.0
    %833 = vmatprep.subr.mxu0 0.0
    %834 = vmatpush1.msra.mxu0 0.0
    %835 = vmatprep.subr.mxu0 0.0
    %836 = vmatpush1.msra.mxu0 0.0
    %837 = vmatprep.subr.mxu0 0.0
    %838 = vmatpush1.msra.mxu0 0.0
    %839 = vmatprep.subr.mxu0 0.0
    %840 = vmatpush1.msra.mxu0 0.0
    %841 = vmatprep.subr.mxu0 0.0
    %842 = vmatpush1.msra.mxu0 0.0
    %843 = vmatprep.subr.mxu0 0.0
    %844 = vmatpush1.msra.mxu0 0.0
    %845 = vmatprep.subr.mxu0 0.0
    %846 = vmatpush1.msra.mxu0 0.0
    %847 = vmatprep.subr.mxu0 0.0
    %848 = vmatpush1.msra.mxu0 0.0
    %849 = vmatprep.subr.mxu0 0.0
    %850 = vmatpush1.msra.mxu0 0.0
    %851 = vmatprep.subr.mxu0 0.0
    %852 = vmatpush1.msra.mxu0 0.0
    %853 = vmatprep.subr.mxu0 0.0
    %854 = vmatpush1.msra.mxu0 0.0
    %855 = vmatprep.subr.mxu0 0.0
    %856 = vmatpush1.msra.mxu0 0.0
    %857 = vmatprep.subr.mxu0 0.0
    %858 = vmatpush1.msra.mxu0 %v820
    %859 = vmatprep.subr.mxu0 0.0
    %860 = vmatpush1.msra.mxu0 %v815
    %861 = vmatprep.subr.mxu0 0.0
    %862 = vmatpush2.msra.mxu0 0.0
    %863 = vmatprep.subr.mxu0 0.0
    %864 = vmatpush2.msra.mxu0 0.0
    %865 = vmatprep.subr.mxu0 0.0
    %866 = vmatpush2.msra.mxu0 0.0
    %867 = vmatprep.subr.mxu0 0.0
    %868 = vmatpush2.msra.mxu0 0.0
    %869 = vmatprep.subr.mxu0 0.0
    %870 = vmatpush2.msra.mxu0 0.0
    %871 = vmatprep.subr.mxu0 0.0
    %872 = vmatpush2.msra.mxu0 0.0
    %873 = vmatprep.subr.mxu0 0.0
    %874 = vmatpush2.msra.mxu0 0.0
    %875 = vmatprep.subr.mxu0 0.0
    %876 = vmatpush2.msra.mxu0 0.0
    %877 = vmatprep.subr.mxu0 0.0
    %878 = vmatpush2.msra.mxu0 0.0
    %879 = vmatprep.subr.mxu0 0.0
    %880 = vmatpush2.msra.mxu0 0.0
    %881 = vmatprep.subr.mxu0 0.0
    %882 = vmatpush2.msra.mxu0 0.0
    %883 = vmatprep.subr.mxu0 0.0
    %884 = vmatpush2.msra.mxu0 0.0
    %885 = vmatprep.subr.mxu0 0.0
    %886 = vmatpush2.msra.mxu0 0.0
    %887 = vmatprep.subr.mxu0 0.0
    %888 = vmatpush2.msra.mxu0 0.0
    %889 = vmatprep.subr.mxu0 0.0
    %890 = vmatpush2.msra.mxu0 0.0
    %891 = vmatprep.subr.mxu0 0.0
    %892 = vmatpush2.msra.mxu0 0.0
    %893 = vmatprep.mubr.f32.mxu0 0.0
    %894 = vmatmul.mubr.f32.gmra.mxu0 %v157
    %v895 = vpop.f32.mrf.mxu0
    %v896 = vadd.f32 %v827, %v895
    %v897 = vpop.f32.mrf.mxu0
    %898 = vmatprep.mubr.f32.mxu0 0.0
    %899 = vmatmul.mubr.f32.gmra.mxu0 %v160
    %v900 = vpop.f32.mrf.mxu0
    %v901 = vadd.f32 %v827, %v900
    %v902 = vpop.f32.mrf.mxu0
    %903 = vdwg.mxu0
    %v904 = vmax.f32 %v896, %v901
    %v905 = vrot.slane %v904, 4
    %v906 = vmax.f32 %v904, %v905
    %v907 = vrot.slane %v906, 2
    %v908 = vmax.f32 %v906, %v907
    %v909 = vrot.slane %v908, 1
    %v910 = vmax.f32 %v908, %v909
    %v911 = vmax.f32 %v729, %v730
    %v912 = vrot.slane %v911, 4
    %v913 = vmax.f32 %v911, %v912
    %v914 = vrot.slane %v913, 2
    %v915 = vmax.f32 %v913, %v914
    %v916 = vrot.slane %v915, 1
    %v917 = vmax.f32 %v915, %v916
    %v918 = vlaneseq
    %v919 = vand.u32 %v918, 127
    %vm920 = vcmp.lt.s32.totalorder %v919, 4
    %v921 = vsel %vm920, %v910, -inf
    %922 = vmax.xlane.f32.xlu0 %v921
    %v923 = vpop.xlane.xlu0 %922
    %v924 = vsub.f32 %v921, %v923
    %v925 = vmul.f32 %v924, 1.442695
    %v926 = vpow.pop %v925
    %v927 = vsel %vm920, %v926, 0.0
    %928 = vadd.xlane.f32.xlu0 %v927
    %v929 = vpop.xlane.xlu0 %928
    %v930 = vrcp.pop %v929
    %v931 = vmul.f32 %v927, %v930
    %932 = vst [vmem:[#allocation7] sm:$0x1] %v931
    %933 = vst [vmem:[#allocation8] sm:$0x1] %v917
    // Predicated region
    $region42: #{gnn_c_forward.1} parent=1 // pred_check
      _
    $region43: #{gnn_c_forward.1} parent=1 // pred_check_branch
      %935 = sbr.rel (0) target = $region45
    $region44: #{gnn_c_forward.1} parent=1 // pred_region
      %s937 = ssub.s32 16, 16
      %938 = vsyncadd [#allocation4], %s937
      %s940 = sshll.u32 [#allocation7], 4
      %s941 = int_to_ptr.vmem [resolvable:$true] %s940
      %943 = dma.vmem_to_hbm [thread:$0]  %s941, 16, %s8, [#allocation4]
    $region45: #{gnn_c_forward.1} parent=1 // pred_fallthru
      _
    // Predicated region
    $region46: #{gnn_c_forward.1} parent=1 // pred_check
      _
    $region47: #{gnn_c_forward.1} parent=1 // pred_check_branch
      %945 = sbr.rel (0) target = $region49
    $region48: #{gnn_c_forward.1} parent=1 // pred_region
      %s947 = ssub.s32 16, 16
      %948 = vsyncadd [#allocation9], %s947
      %s950 = sshll.u32 [#allocation8], 4
      %s951 = int_to_ptr.vmem [resolvable:$true] %s950
      %953 = dma.vmem_to_hbm [thread:$0]  %s951, 16, %s9, [#allocation9]
    $region49: #{gnn_c_forward.1} parent=1 // pred_fallthru
      _
    // Predicated region
    $region50: #{gnn_c_forward.1} parent=1 // pred_check
      _
    $region51: #{gnn_c_forward.1} parent=1 // pred_check_branch
      %955 = sbr.rel (0) target = $region53
    $region52: #{gnn_c_forward.1} parent=1 // pred_region
      %956 = dma.done [#allocation4], 16
    $region53: #{gnn_c_forward.1} parent=1 // pred_fallthru
      _
    // Predicated region
    $region54: #{gnn_c_forward.1} parent=1 // pred_check
      _
    $region55: #{gnn_c_forward.1} parent=1 // pred_check_branch
      %958 = sbr.rel (0) target = $region57
    $region56: #{gnn_c_forward.1} parent=1 // pred_region
      %959 = dma.done [#allocation9], 16
    $region57: #{gnn_c_forward.1} parent=1 // pred_fallthru
      _
    %960 = vsyncpa [#allocation3], 1
    %961 = vsyncpa [#allocation6], 1
    %962 = vsyncpa [#allocation4], 1
    %963 = vsyncpa [#allocation9], 1

</llo_original>
